<compile_context>
chip_gen: v5e
topology: v5e:2x2
jax: 0.10.0
libtpu: 0.0.40
codegen_flags: <defaults>
</compile_context>

<pallas_src>
import functools

import jax
import jax.numpy as jnp
from jax.experimental import pallas as pl
from jax.experimental.pallas import tpu as pltpu

IN_FEATURES = 5
OUT_FEATURES = 5


def linear_kernel(w_ref, b_ref, x_ref, o_ref):
    # w_ref: (OUT, IN)   resident VMEM block (constant index across the grid)
    # b_ref: (OUT, 1)    resident VMEM block
    # x_ref: (IN, TB)    batch-on-lanes tile of the transposed input
    # o_ref: (OUT, TB)   batch-on-lanes tile of the transposed output
    x = x_ref[...]
    w = w_ref[...]
    # 5-term unrolled broadcast-FMA on the VPU:
    #   acc[j, n] = sum_k w[j, k] * x[k, n]
    acc = w[:, 0:1] * x[0:1, :]
    for k in range(1, IN_FEATURES):
        acc = acc + w[:, k : k + 1] * x[k : k + 1, :]
    o_ref[...] = (acc + b_ref[...]).astype(o_ref.dtype)


def _round_up(x, m):
    return ((x + m - 1) // m) * m


@functools.partial(jax.jit, static_argnames=("block_b",))
def linear_forward(x, w, b, *, block_b=1024):
    """y = x @ w.T + b  with x: (B, IN), w: (OUT, IN), b: (OUT,)."""
    assert block_b % 128 == 0, "batch tile must be a multiple of 128 lanes"
    batch = x.shape[0]

    # Lane-dense layout: batch on the last (lane) axis, padded to the tile.
    xt = x.T.astype(jnp.float32)                       # (IN, B)
    tb = min(block_b, _round_up(batch, 128))           # 128-aligned tile width
    padded = _round_up(batch, tb)
    if padded != batch:
        xt = jnp.pad(xt, ((0, 0), (0, padded - batch)))

    b2d = b.reshape(OUT_FEATURES, 1).astype(jnp.float32)
    grid = (padded // tb,)

    yt = pl.pallas_call(
        linear_kernel,
        out_shape=jax.ShapeDtypeStruct((OUT_FEATURES, padded), jnp.float32),
        grid=grid,
        in_specs=[
            # Weight / bias: tiny resident blocks, same tile every grid step.
            pl.BlockSpec((OUT_FEATURES, IN_FEATURES), lambda i: (0, 0)),
            pl.BlockSpec((OUT_FEATURES, 1), lambda i: (0, 0)),
            # Input: batch tiled along the lane axis.
            pl.BlockSpec((IN_FEATURES, tb), lambda i: (0, i)),
        ],
        out_specs=pl.BlockSpec((OUT_FEATURES, tb), lambda i: (0, i)),
        compiler_params=pltpu.CompilerParams(
            dimension_semantics=("parallel",),  # shard batch tiles across TCs (v7x)
        ),
    )(w.astype(jnp.float32), b2d, xt)

    # Back to the PyTorch (B, OUT) convention; drop padding columns.
    return yt[:, :batch].T.astype(x.dtype)


if __name__ == "__main__":
    key = jax.random.PRNGKey(0)
    kx, kw, kb = jax.random.split(key, 3)

    # Mimic nn.Linear's uniform(-1/sqrt(in_features), 1/sqrt(in_features)) init.
    bound = 1.0 / (IN_FEATURES ** 0.5)
    W = jax.random.uniform(kw, (OUT_FEATURES, IN_FEATURES), jnp.float32, -bound, bound)
    b = jax.random.uniform(kb, (OUT_FEATURES,), jnp.float32, -bound, bound)

    # Small example input: batch of 8 vectors of size 5.
    x = jax.random.normal(kx, (8, IN_FEATURES), jnp.float32)

    y = linear_forward(x, W, b)
    y = jax.block_until_ready(y)

    # Sanity check against plain-JAX reference.
    y_ref = x @ W.T + b
    assert jnp.allclose(y, y_ref, atol=1e-5), "mismatch vs reference"

    print("KERNEL_OK")
</pallas_src>

<mosaic_0001>
module attributes {stable_mosaic.version = 11 : i64} {
  func.func @linear_kernel(%arg0: i32, %arg1: memref<5x5xf32, #tpu.memory_space<vmem>>, %arg2: memref<5x1xf32, #tpu.memory_space<vmem>>, %arg3: memref<5x128xf32, #tpu.memory_space<vmem>>, %arg4: memref<5x128xf32, #tpu.memory_space<vmem>>) attributes {dimension_semantics = [#tpu.dimension_semantics<parallel>], iteration_bounds = array<i64: 1>, scalar_prefetch = 0 : i64, scratch_operands = 0 : i64, tpu.core_type = #tpu.core_type<tc>, window_params = [{pipeline_mode = #tpu.pipeline_mode<synchronous>, transform_indices = @transform_0, window_bounds = array<i64: 5, 5>}, {pipeline_mode = #tpu.pipeline_mode<synchronous>, transform_indices = @transform_1, window_bounds = array<i64: 5, 1>}, {transform_indices = @transform_2, window_bounds = array<i64: 5, 128>}, {transform_indices = @transform_3, window_bounds = array<i64: 5, 128>}]} {
    %c0 = arith.constant 0 : index
    %c0_0 = arith.constant 0 : index
    %0 = vector.load %arg3[%c0, %c0_0] : memref<5x128xf32, #tpu.memory_space<vmem>>, vector<5x128xf32>
    %c0_1 = arith.constant 0 : index
    %c0_2 = arith.constant 0 : index
    %1 = vector.load %arg1[%c0_1, %c0_2] : memref<5x5xf32, #tpu.memory_space<vmem>>, vector<5x5xf32>
    %2 = vector.extract_strided_slice %1 {offsets = [0, 0], sizes = [5, 1], strides = [1, 1]} : vector<5x5xf32> to vector<5x1xf32>
    %3 = vector.extract_strided_slice %0 {offsets = [0, 0], sizes = [1, 128], strides = [1, 1]} : vector<5x128xf32> to vector<1x128xf32>
    %4 = vector.broadcast %2 : vector<5x1xf32> to vector<5x128xf32>
    %5 = vector.broadcast %3 : vector<1x128xf32> to vector<5x128xf32>
    %6 = arith.mulf %4, %5 : vector<5x128xf32>
    %7 = vector.extract_strided_slice %1 {offsets = [0, 1], sizes = [5, 1], strides = [1, 1]} : vector<5x5xf32> to vector<5x1xf32>
    %8 = vector.extract_strided_slice %0 {offsets = [1, 0], sizes = [1, 128], strides = [1, 1]} : vector<5x128xf32> to vector<1x128xf32>
    %9 = vector.broadcast %7 : vector<5x1xf32> to vector<5x128xf32>
    %10 = vector.broadcast %8 : vector<1x128xf32> to vector<5x128xf32>
    %11 = arith.mulf %9, %10 : vector<5x128xf32>
    %12 = arith.addf %6, %11 : vector<5x128xf32>
    %13 = vector.extract_strided_slice %1 {offsets = [0, 2], sizes = [5, 1], strides = [1, 1]} : vector<5x5xf32> to vector<5x1xf32>
    %14 = vector.extract_strided_slice %0 {offsets = [2, 0], sizes = [1, 128], strides = [1, 1]} : vector<5x128xf32> to vector<1x128xf32>
    %15 = vector.broadcast %13 : vector<5x1xf32> to vector<5x128xf32>
    %16 = vector.broadcast %14 : vector<1x128xf32> to vector<5x128xf32>
    %17 = arith.mulf %15, %16 : vector<5x128xf32>
    %18 = arith.addf %12, %17 : vector<5x128xf32>
    %19 = vector.extract_strided_slice %1 {offsets = [0, 3], sizes = [5, 1], strides = [1, 1]} : vector<5x5xf32> to vector<5x1xf32>
    %20 = vector.extract_strided_slice %0 {offsets = [3, 0], sizes = [1, 128], strides = [1, 1]} : vector<5x128xf32> to vector<1x128xf32>
    %21 = vector.broadcast %19 : vector<5x1xf32> to vector<5x128xf32>
    %22 = vector.broadcast %20 : vector<1x128xf32> to vector<5x128xf32>
    %23 = arith.mulf %21, %22 : vector<5x128xf32>
    %24 = arith.addf %18, %23 : vector<5x128xf32>
    %25 = vector.extract_strided_slice %1 {offsets = [0, 4], sizes = [5, 1], strides = [1, 1]} : vector<5x5xf32> to vector<5x1xf32>
    %26 = vector.extract_strided_slice %0 {offsets = [4, 0], sizes = [1, 128], strides = [1, 1]} : vector<5x128xf32> to vector<1x128xf32>
    %27 = vector.broadcast %25 : vector<5x1xf32> to vector<5x128xf32>
    %28 = vector.broadcast %26 : vector<1x128xf32> to vector<5x128xf32>
    %29 = arith.mulf %27, %28 : vector<5x128xf32>
    %30 = arith.addf %24, %29 : vector<5x128xf32>
    %c0_3 = arith.constant 0 : index
    %c0_4 = arith.constant 0 : index
    %31 = vector.load %arg2[%c0_3, %c0_4] : memref<5x1xf32, #tpu.memory_space<vmem>>, vector<5x1xf32>
    %32 = vector.broadcast %31 : vector<5x1xf32> to vector<5x128xf32>
    %33 = arith.addf %30, %32 : vector<5x128xf32>
    %c0_5 = arith.constant 0 : index
    %c0_6 = arith.constant 0 : index
    %34 = vector.load %arg4[%c0_5, %c0_6] : memref<5x128xf32, #tpu.memory_space<vmem>>, vector<5x128xf32>
    tpu.vector_store %arg4[%c0_5, %c0_6], %33 {strides = array<i32>} : memref<5x128xf32, #tpu.memory_space<vmem>>, vector<5x128xf32>,
    return
  }
  func.func @transform_0(%arg0: i32) -> (i32, i32) {
    %c0_i32 = arith.constant 0 : i32
    %c0_i32_0 = arith.constant 0 : i32
    %c0_i32_1 = arith.constant 0 : i32
    return %c0_i32, %c0_i32_0 : i32, i32
  }
  func.func @transform_1(%arg0: i32) -> (i32, i32) {
    %c0_i32 = arith.constant 0 : i32
    %c0_i32_0 = arith.constant 0 : i32
    %c0_i32_1 = arith.constant 0 : i32
    return %c0_i32, %c0_i32_0 : i32, i32
  }
  func.func @transform_2(%arg0: i32) -> (i32, i32) {
    %c0_i32 = arith.constant 0 : i32
    %c0_i32_0 = arith.constant 0 : i32
    return %c0_i32, %arg0 : i32, i32
  }
  func.func @transform_3(%arg0: i32) -> (i32, i32) {
    %c0_i32 = arith.constant 0 : i32
    %c0_i32_0 = arith.constant 0 : i32
    return %c0_i32, %arg0 : i32, i32
  }
}

</mosaic_0001>

<llo_original>
// kernel: linear_forward.1
$region0: #{linear_forward.1}
  #allocation0 [shape = 'u32[]', space=smem, size = 0x4, offset = 0x4, fixed_abs, tag = 'smem constant byte address 0x4 - core index']
  #allocation1 [shape = 'u32[72,128]{1,0:T(1,128)}', space=vmem, size = 0x9000, scoped, tag = 'internal scratch']
  %s0 = inlined_call_operand.vmem [shape: f32[5,5], index: 0, kind: input, shape index: {}]
  %s1 = inlined_call_operand.vmem [shape: f32[5,1], index: 1, kind: input, shape index: {}]
  %s2 = inlined_call_operand.vmem [shape: f32[5,128], index: 2, kind: input, shape index: {}]
  %s3 = inlined_call_operand.vmem [shape: f32[5,128], index: 3, kind: output, shape index: {}]
  %s4 = sld [smem:[#allocation0]]
  $region22: #{linear_forward.1} parent=0
    _
  %s6 = ssub.s32 1, %s4
  %s7 = scalar_select 0, %s6, %s4
  // Predicated region
  $region2: #{linear_forward.1} parent=0 // pred_check
    _
  $region3: #{linear_forward.1} parent=0 // pred_check_branch
    %9 = sbr.rel (0) target = $region5
  $region4: #{linear_forward.1} parent=0 // pred_region
    _
  $region5: #{linear_forward.1} parent=0 // pred_fallthru
    _
  // Predicated region
  $region6: #{linear_forward.1} parent=0 // pred_check
    _
  $region7: #{linear_forward.1} parent=0 // pred_check_branch
    %11 = sbr.rel (0) target = $region9
  $region8: #{linear_forward.1} parent=0 // pred_region
    _
  $region9: #{linear_forward.1} parent=0 // pred_fallthru
    _
  // Predicated region
  $region10: #{linear_forward.1} parent=0 // pred_check
    _
  $region11: #{linear_forward.1} parent=0 // pred_check_branch
    %13 = sbr.rel (0) target = $region13
  $region12: #{linear_forward.1} parent=0 // pred_region
    _
  $region13: #{linear_forward.1} parent=0 // pred_fallthru
    _
  %v14 = vld [vmem:[%s2] sm:$0x1f]
  %v15 = vld [vmem:[%s0] sm:$0x1f]
  %17 = vset.pattern.permute.xlu0 0
  %18 = vperm.xlu0 %17, %v15
  %v19 = vpop.permute.xlu0 %18
  %v21 = vperm.slane %v14, 0
  %v22 = vmul.f32 %v19, %v21
  %23 = vset.pattern.permute.xlu0 1
  %24 = vperm.xlu0 %23, %v15
  %v25 = vpop.permute.xlu0 %24
  %v27 = vperm.slane %v14, 1
  %v28 = vmul.f32 %v25, %v27
  %v29 = vadd.f32 %v22, %v28
  %30 = vset.pattern.permute.xlu0 2
  %31 = vperm.xlu0 %30, %v15
  %v32 = vpop.permute.xlu0 %31
  %v34 = vperm.slane %v14, 2
  %v35 = vmul.f32 %v32, %v34
  %v36 = vadd.f32 %v29, %v35
  %37 = vset.pattern.permute.xlu0 3
  %38 = vperm.xlu0 %37, %v15
  %v39 = vpop.permute.xlu0 %38
  %v41 = vperm.slane %v14, 3
  %v42 = vmul.f32 %v39, %v41
  %v43 = vadd.f32 %v36, %v42
  %44 = vset.pattern.permute.xlu0 4
  %45 = vperm.xlu0 %44, %v15
  %v46 = vpop.permute.xlu0 %45
  %v48 = vperm.slane %v14, 4
  %v49 = vmul.f32 %v46, %v48
  %v50 = vadd.f32 %v43, %v49
  %v51 = vld [vmem:[%s1] sm:$0x1f]
  %53 = vset.pattern.permute.xlu0 0
  %54 = vperm.xlu0 %53, %v51
  %v55 = vpop.permute.xlu0 %54
  %v57 = vadd.f32 %v50, %v55
  %58 = vst [vmem:[%s3] sm:$0x1f] %v57
  // Predicated region
  $region14: #{linear_forward.1} parent=0 // pred_check
    _
  $region15: #{linear_forward.1} parent=0 // pred_check_branch
    %60 = sbr.rel (0) target = $region17
  $region16: #{linear_forward.1} parent=0 // pred_region
    _
  $region17: #{linear_forward.1} parent=0 // pred_fallthru
    _
  // Predicated region
  $region18: #{linear_forward.1} parent=0 // pred_check
    _
  $region19: #{linear_forward.1} parent=0 // pred_check_branch
    %62 = sbr.rel (0) target = $region21
  $region20: #{linear_forward.1} parent=0 // pred_region
    _
  $region21: #{linear_forward.1} parent=0 // pred_fallthru
    _

</llo_original>
